<compile_context>
chip_gen: v7x
topology: tpu7x:2x2x1
jax: 0.10.0
libtpu: 0.0.40
codegen_flags: <defaults>
</compile_context>

<pallas_src>
import functools

import jax
import jax.numpy as jnp
from jax.experimental import pallas as pl
from jax.experimental.pallas import tpu as pltpu


def _round_up(x, m):
    return ((x + m - 1) // m) * m


def _sublane_multiple(dtype):
    # Sub-32-bit dtypes pack along sublanes: 8 rows for f32, 16 for bf16, 32 for int8/fp8.
    return max(8, 32 // jnp.dtype(dtype).itemsize)


def _vmem_capacity_bytes():
    try:
        return int(pltpu.get_tpu_info().vmem_capacity_bytes)
    except Exception:
        # Conservative fallback: v7x per-core VMEM (smallest across generations).
        return 64 << 20


def _layernorm_kernel(x_ref, gamma_ref, beta_ref, o_ref, *, eps, features, approx):
    x = x_ref[...].astype(jnp.float32)                       # (tm, F)

    # Single-pass moments: both reductions depend only on x, so the two XLU
    # reduces can overlap (no mean -> centered -> reduce dependency chain).
    n = float(features)
    s1 = jnp.sum(x, axis=-1, keepdims=True)                  # (tm, 1)
    s2 = jnp.sum(x * x, axis=-1, keepdims=True)              # (tm, 1)
    mean = s1 * (1.0 / n)
    inv_nm1 = (1.0 / (features - 1)) if features > 1 else float("nan")
    var = (s2 - n * mean * mean) * inv_nm1                   # unbiased (ddof=1)
    var = jnp.maximum(var, 0.0)                              # guard fp cancellation
    std = jnp.sqrt(var)

    # Per-row reciprocal on the (tm, 1) column (EUP slot) + broadcast multiply,
    # instead of an F-wide divide.  approx=True uses the fast EUP path.
    inv = pl.reciprocal(std + eps, approx=approx)

    centered = x - mean
    gamma = gamma_ref[...]                                    # (1, F), already f32
    beta = beta_ref[...]                                      # (1, F), already f32
    out = gamma * (centered * inv) + beta
    o_ref[...] = out.astype(o_ref.dtype)


def layer_norm(x, a_2, b_2, eps=1e-6, *, row_tile=None, approx_reciprocal=True,
               vmem_budget_bytes=None):
    """LayerNorm over the last axis of x. x: (..., F); a_2, b_2: (F,).

    Fastest when F is a multiple of 128 (lane-dense stores); arbitrary F works
    because the block covers the full feature axis.
    """
    orig_shape = x.shape
    features = orig_shape[-1]
    x2d = x.reshape(-1, features)
    rows = x2d.shape[0]

    itemsize = jnp.dtype(x.dtype).itemsize
    sub = _sublane_multiple(x.dtype)
    cap = _vmem_capacity_bytes()

    if vmem_budget_bytes is None:
        # Budget for the 4 pipelined (row_tile, F) buffers (x + out, each
        # double-buffered): a quarter of physical VMEM per generation
        # (32 MiB on v5e/v6e, 16 MiB on v7x).
        vmem_budget_bytes = cap // 4

    if row_tile is None:
        bytes_per_row = features * itemsize
        max_tile = max(sub, vmem_budget_bytes // (4 * bytes_per_row))
        row_tile = min(max_tile, 2048, _round_up(rows, sub))
        row_tile = max(sub, (row_tile // sub) * sub)
        # Prefer >=2 row blocks so the parallel grid axis can shard across the
        # two TensorCores on v7x (neutral on single-TC chips).
        if rows > 2 * sub:
            half = (rows + 1) // 2
            row_tile = min(row_tile, max(sub, _round_up(half, sub)))
    else:
        row_tile = max(sub, _round_up(int(row_tile), sub))

    # No padding copy: the tail block (if rows % row_tile != 0) is handled by
    # Pallas with masked stores; rows are independent so this is safe.
    grid = (pl.cdiv(rows, row_tile),)

    # Hoist the f32 casts of the grid-invariant parameter blocks out of the kernel.
    gamma = a_2.astype(jnp.float32).reshape(1, features)
    beta = b_2.astype(jnp.float32).reshape(1, features)

    # Explicit scoped-VMEM limit: 2x(in) + 2x(out) buffers + resident params + margin,
    # clamped to stay well inside every generation's physical VMEM.
    buf_bytes = 4 * row_tile * features * itemsize
    param_bytes = 2 * 2 * features * 4
    vmem_limit = max(32 << 20, min(cap // 2, buf_bytes + param_bytes + (4 << 20)))

    kernel = functools.partial(_layernorm_kernel, eps=float(eps),
                               features=features, approx=approx_reciprocal)

    out = pl.pallas_call(
        kernel,
        out_shape=jax.ShapeDtypeStruct((rows, features), x.dtype),
        grid_spec=pltpu.PrefetchScalarGridSpec(
            num_scalar_prefetch=0,
            grid=grid,
            in_specs=[
                pl.BlockSpec((row_tile, features), lambda i: (i, 0)),
                pl.BlockSpec((1, features), lambda i: (0, 0)),
                pl.BlockSpec((1, features), lambda i: (0, 0)),
            ],
            out_specs=pl.BlockSpec((row_tile, features), lambda i: (i, 0)),
        ),
        compiler_params=pltpu.CompilerParams(
            dimension_semantics=("parallel",),
            vmem_limit_bytes=int(vmem_limit)),
    )(x2d, gamma, beta)

    return out.reshape(orig_shape)


def _reference_layer_norm(x, a_2, b_2, eps=1e-6):
    mean = jnp.mean(x, axis=-1, keepdims=True)
    std = jnp.std(x, axis=-1, keepdims=True, ddof=1)   # torch.std: unbiased
    return a_2 * (x - mean) / (std + eps) + b_2


if __name__ == "__main__":
    key = jax.random.PRNGKey(0)
    k1, k2 = jax.random.split(key)

    # Case 1: lane-aligned feature axis (multiple of 128), default approx path.
    hidden = 128
    a_2 = jnp.ones((hidden,), dtype=jnp.float32)    # nn.Parameter(torch.ones(features))
    b_2 = jnp.zeros((hidden,), dtype=jnp.float32)   # nn.Parameter(torch.zeros(features))
    x = jax.random.normal(k1, (2, 8, hidden), dtype=jnp.float32)

    out = jax.block_until_ready(layer_norm(x, a_2, b_2, eps=1e-6))
    ref = _reference_layer_norm(x, a_2, b_2, eps=1e-6)
    assert out.shape == x.shape
    # Loose tolerance: the approximate EUP reciprocal trades ~1e-4 relative
    # error for a free execution slot.
    assert jnp.allclose(out, ref, atol=2e-2, rtol=2e-2), "mismatch (approx path)"

    # Case 2: exact-reciprocal path on a ragged shape (rows not a multiple of
    # the tile, feature axis not a multiple of 128) -> exercises the masked
    # tail block and the full-feature-dim BlockSpec.
    hidden2 = 96
    a2b = jnp.ones((hidden2,), dtype=jnp.float32)
    b2b = jnp.zeros((hidden2,), dtype=jnp.float32)
    x2 = jax.random.normal(k2, (3, 5, hidden2), dtype=jnp.float32)

    out2 = jax.block_until_ready(
        layer_norm(x2, a2b, b2b, eps=1e-6, approx_reciprocal=False))
    ref2 = _reference_layer_norm(x2, a2b, b2b, eps=1e-6)
    assert out2.shape == x2.shape
    assert jnp.allclose(out2, ref2, atol=1e-5, rtol=1e-5), "mismatch (exact path)"

    print("KERNEL_OK")
</pallas_src>

<mosaic_0001>
module attributes {stable_mosaic.version = 11 : i64} {
  func.func @_layernorm_kernel(%arg0: i32, %arg1: memref<16x128xf32, #tpu.memory_space<vmem>>, %arg2: memref<1x128xf32, #tpu.memory_space<vmem>>, %arg3: memref<1x128xf32, #tpu.memory_space<vmem>>, %arg4: memref<16x128xf32, #tpu.memory_space<vmem>>) attributes {dimension_semantics = [#tpu.dimension_semantics<parallel>], iteration_bounds = array<i64: 1>, scalar_prefetch = 0 : i64, scratch_operands = 0 : i64, tpu.core_type = #tpu.core_type<tc>, window_params = [{transform_indices = @transform_0, window_bounds = array<i64: 16, 128>}, {pipeline_mode = #tpu.pipeline_mode<synchronous>, transform_indices = @transform_1, window_bounds = array<i64: 1, 128>}, {pipeline_mode = #tpu.pipeline_mode<synchronous>, transform_indices = @transform_2, window_bounds = array<i64: 1, 128>}, {transform_indices = @transform_3, window_bounds = array<i64: 16, 128>}]} {
    %c0 = arith.constant 0 : index
    %c0_0 = arith.constant 0 : index
    %0 = vector.load %arg1[%c0, %c0_0] : memref<16x128xf32, #tpu.memory_space<vmem>>, vector<16x128xf32>
    %cst = arith.constant dense<0.000000e+00> : vector<16xf32>
    %1 = vector.multi_reduction <add>, %0, %cst [1] : vector<16x128xf32> to vector<16xf32>
    %2 = vector.shape_cast %1 : vector<16xf32> to vector<16x1xf32>
    %3 = arith.mulf %0, %0 : vector<16x128xf32>
    %cst_1 = arith.constant dense<0.000000e+00> : vector<16xf32>
    %4 = vector.multi_reduction <add>, %3, %cst_1 [1] : vector<16x128xf32> to vector<16xf32>
    %5 = vector.shape_cast %4 : vector<16xf32> to vector<16x1xf32>
    %cst_2 = arith.constant 7.812500e-03 : f32
    %6 = vector.broadcast %cst_2 : f32 to vector<16x1xf32>
    %7 = arith.mulf %2, %6 : vector<16x1xf32>
    %cst_3 = arith.constant 1.280000e+02 : f32
    %8 = vector.broadcast %cst_3 : f32 to vector<16x1xf32>
    %9 = arith.mulf %8, %7 : vector<16x1xf32>
    %10 = arith.mulf %9, %7 : vector<16x1xf32>
    %11 = arith.subf %5, %10 : vector<16x1xf32>
    %cst_4 = arith.constant 0.00787401571 : f32
    %12 = vector.broadcast %cst_4 : f32 to vector<16x1xf32>
    %13 = arith.mulf %11, %12 : vector<16x1xf32>
    %cst_5 = arith.constant 0.000000e+00 : f32
    %14 = vector.broadcast %cst_5 : f32 to vector<16x1xf32>
    %15 = arith.maximumf %13, %14 : vector<16x1xf32>
    %16 = math.sqrt %15 : vector<16x1xf32>
    %cst_6 = arith.constant 9.99999997E-7 : f32
    %17 = vector.broadcast %cst_6 : f32 to vector<16x1xf32>
    %18 = arith.addf %16, %17 : vector<16x1xf32>
    %19 = tpu.reciprocal %18 {approx = true} : vector<16x1xf32> -> vector<16x1xf32>
    %20 = vector.broadcast %7 : vector<16x1xf32> to vector<16x128xf32>
    %21 = arith.subf %0, %20 : vector<16x128xf32>
    %c0_7 = arith.constant 0 : index
    %c0_8 = arith.constant 0 : index
    %22 = vector.load %arg2[%c0_7, %c0_8] : memref<1x128xf32, #tpu.memory_space<vmem>>, vector<1x128xf32>
    %c0_9 = arith.constant 0 : index
    %c0_10 = arith.constant 0 : index
    %23 = vector.load %arg3[%c0_9, %c0_10] : memref<1x128xf32, #tpu.memory_space<vmem>>, vector<1x128xf32>
    %24 = vector.broadcast %19 : vector<16x1xf32> to vector<16x128xf32>
    %25 = arith.mulf %21, %24 : vector<16x128xf32>
    %26 = vector.broadcast %22 : vector<1x128xf32> to vector<16x128xf32>
    %27 = arith.mulf %26, %25 : vector<16x128xf32>
    %28 = vector.broadcast %23 : vector<1x128xf32> to vector<16x128xf32>
    %29 = arith.addf %27, %28 : vector<16x128xf32>
    %c0_11 = arith.constant 0 : index
    %c0_12 = arith.constant 0 : index
    %30 = vector.load %arg4[%c0_11, %c0_12] : memref<16x128xf32, #tpu.memory_space<vmem>>, vector<16x128xf32>
    tpu.vector_store %arg4[%c0_11, %c0_12], %29 {strides = array<i32>} : memref<16x128xf32, #tpu.memory_space<vmem>>, vector<16x128xf32>,
    return
  }
  func.func @transform_0(%arg0: i32) -> (i32, i32) {
    %c0_i32 = arith.constant 0 : i32
    %c0_i32_0 = arith.constant 0 : i32
    return %arg0, %c0_i32 : i32, i32
  }
  func.func @transform_1(%arg0: i32) -> (i32, i32) {
    %c0_i32 = arith.constant 0 : i32
    %c0_i32_0 = arith.constant 0 : i32
    %c0_i32_1 = arith.constant 0 : i32
    return %c0_i32, %c0_i32_0 : i32, i32
  }
  func.func @transform_2(%arg0: i32) -> (i32, i32) {
    %c0_i32 = arith.constant 0 : i32
    %c0_i32_0 = arith.constant 0 : i32
    %c0_i32_1 = arith.constant 0 : i32
    return %c0_i32, %c0_i32_0 : i32, i32
  }
  func.func @transform_3(%arg0: i32) -> (i32, i32) {
    %c0_i32 = arith.constant 0 : i32
    %c0_i32_0 = arith.constant 0 : i32
    return %arg0, %c0_i32 : i32, i32
  }
}

</mosaic_0001>

<llo_original>
// kernel: tpu_custom_call.1
$region0: #{tpu_custom_call.1}
  #allocation0 [shape = 'u32[]', space=smem, size = 0x4, offset = 0x4, fixed_abs, tag = 'smem constant byte address 0x4 - core index']
  #allocation1 [shape = 'u32[144,128]{1,0:T(1,128)}', space=vmem, size = 0x12000, scoped, tag = 'internal scratch']
  %s0 = inlined_call_operand.hbm [shape: f32[16,128], index: 0, kind: input, shape index: {}]
  %s1 = inlined_call_operand.vmem [shape: f32[1,128], index: 1, kind: input, shape index: {}]
  %s2 = inlined_call_operand.vmem [shape: f32[1,128], index: 2, kind: input, shape index: {}]
  %s3 = inlined_call_operand.hbm [shape: f32[16,128], index: 3, kind: output, shape index: {}]
  %s4 = sld [smem:[#allocation0]]
  $region26: #{tpu_custom_call.1} parent=0
    _
  %s6 = ssub.s32 1, %s4
  %s7 = scalar_select 0, %s6, %s4
  $region1: #{tpu_custom_call.1} parent=0
    #allocation2 [shape = 'u8[8192]{0}', space=vmem, size = 0x2000, scoped, tag = 'input window, operand 0, single buffered']
    #allocation3 [shape = 's32[1]{0}', space=sflag, size = 0x4, scoped, tag = 'scoped memory for tpu_custom_call.1']
    #allocation4 [shape = 's32[1]{0}', space=sflag, size = 0x4, scoped, tag = 'scoped memory for tpu_custom_call.1']
    #allocation5 [shape = 'u8[8192]{0}', space=vmem, size = 0x2000, scoped, tag = 'output window, operand 0, single buffered']
    %8 = vsyncpa [#allocation3], 0
    %9 = vsyncpa [#allocation4], 0
    // Predicated region
    $region2: #{tpu_custom_call.1} parent=1 // pred_check
      _
    $region3: #{tpu_custom_call.1} parent=1 // pred_check_branch
      %11 = sbr.rel (0) target = $region5
    $region4: #{tpu_custom_call.1} parent=1 // pred_region
      %s13 = ssub.s32 256, 256
      %14 = vsyncadd [#allocation3], %s13
      %s15 = sshll.u32 [#allocation2], 4
      %s16 = int_to_ptr.vmem [resolvable:$true] %s15
      %21 = dma.hbm_to_vmem [thread:$0]  %s0, 256, %s16, [#allocation3], 128, 128, 8
    $region5: #{tpu_custom_call.1} parent=1 // pred_fallthru
      _
    // Predicated region
    $region6: #{tpu_custom_call.1} parent=1 // pred_check
      _
    $region7: #{tpu_custom_call.1} parent=1 // pred_check_branch
      %23 = sbr.rel (0) target = $region9
    $region8: #{tpu_custom_call.1} parent=1 // pred_region
      _
    $region9: #{tpu_custom_call.1} parent=1 // pred_fallthru
      _
    // Predicated region
    $region10: #{tpu_custom_call.1} parent=1 // pred_check
      _
    $region11: #{tpu_custom_call.1} parent=1 // pred_check_branch
      %25 = sbr.rel (0) target = $region13
    $region12: #{tpu_custom_call.1} parent=1 // pred_region
      _
    $region13: #{tpu_custom_call.1} parent=1 // pred_fallthru
      _
    // Predicated region
    $region14: #{tpu_custom_call.1} parent=1 // pred_check
      _
    $region15: #{tpu_custom_call.1} parent=1 // pred_check_branch
      %27 = sbr.rel (0) target = $region17
    $region16: #{tpu_custom_call.1} parent=1 // pred_region
      %28 = dma.done [#allocation3], 256
    $region17: #{tpu_custom_call.1} parent=1 // pred_fallthru
      _
    %v29 = vld [vmem:[#allocation2] sm:$0xff]
    %v30 = vld [vmem:[#allocation2 + $0x8] sm:$0xff]
    %31 = vadd.xlane.f32.xlu0 %v29
    %v32 = vpop.xlane.xlu0 %31
    %33 = vadd.xlane.f32.xlu0 %v30
    %v34 = vpop.xlane.xlu0 %33
    %v35 = vmul.f32 %v29, %v29
    %v36 = vmul.f32 %v30, %v30
    %37 = vadd.xlane.f32.xlu0 %v35
    %v38 = vpop.xlane.xlu0 %37
    %39 = vadd.xlane.f32.xlu0 %v36
    %v40 = vpop.xlane.xlu0 %39
    %v41 = vmul.f32 %v32, 0.0078125
    %v42 = vmul.f32 %v34, 0.0078125
    %v43 = vmul.f32 %v41, 128.0
    %v44 = vmul.f32 %v42, 128.0
    %v45 = vmul.f32 %v43, %v41
    %v46 = vmul.f32 %v44, %v42
    %v47 = vsub.f32 %v38, %v45
    %v48 = vsub.f32 %v40, %v46
    %v49 = vmul.f32 %v47, 0.007874016
    %v50 = vmul.f32 %v48, 0.007874016
    %v51 = vmax.f32 %v49, 0.0
    %v52 = vmax.f32 %v50, 0.0
    %v53 = vrsqrt.pop %v51
    %v54 = vmul.f32 %v51, %v53
    %vm55 = vcmp.eq.f32.partialorder %v51, inf
    %v56 = vsel %vm55, %v51, %v54
    %vm57 = vcmp.eq.f32.partialorder %v51, 0.0
    %v58 = vand.u32 %v51, 2147483648
    %v59 = vsel %vm57, %v58, %v56
    %v60 = vrsqrt.pop %v52
    %v61 = vmul.f32 %v52, %v60
    %vm62 = vcmp.eq.f32.partialorder %v52, inf
    %v63 = vsel %vm62, %v52, %v61
    %vm64 = vcmp.eq.f32.partialorder %v52, 0.0
    %v65 = vand.u32 %v52, 2147483648
    %v66 = vsel %vm64, %v65, %v63
    %v67 = vadd.f32 %v59, 1e-06
    %v68 = vadd.f32 %v66, 1e-06
    %v69 = vrcp.pop %v67
    %v70 = vrcp.pop %v68
    %v71 = vsub.f32 %v29, %v41
    %v72 = vsub.f32 %v30, %v42
    %v73 = vld [vmem:[%s1] sm:$0x1]
    %v74 = vld [vmem:[%s2] sm:$0x1]
    %v75 = vmul.f32 %v71, %v69
    %v76 = vmul.f32 %v72, %v70
    %v78 = vlaneseq
    %v79 = vshrl.u32 %v78, 7
    %v80 = vsub.s32 0, %v79
    %v81 = vrot.slane %v73, %v80
    %v83 = vmul.f32 %v81, %v75
    %v84 = vmul.f32 %v81, %v76
    %v86 = vlaneseq
    %v87 = vshrl.u32 %v86, 7
    %v88 = vsub.s32 0, %v87
    %v89 = vrot.slane %v74, %v88
    %v91 = vadd.f32 %v83, %v89
    %v92 = vadd.f32 %v84, %v89
    %93 = vst [vmem:[#allocation5] sm:$0xff] %v91
    %94 = vst [vmem:[#allocation5 + $0x8] sm:$0xff] %v92
    // Predicated region
    $region18: #{tpu_custom_call.1} parent=1 // pred_check
      _
    $region19: #{tpu_custom_call.1} parent=1 // pred_check_branch
      %96 = sbr.rel (0) target = $region21
    $region20: #{tpu_custom_call.1} parent=1 // pred_region
      %s98 = ssub.s32 256, 256
      %99 = vsyncadd [#allocation4], %s98
      %s100 = sshll.u32 [#allocation5], 4
      %s101 = int_to_ptr.vmem [resolvable:$true] %s100
      %106 = dma.vmem_to_hbm [thread:$0]  %s101, 256, %s3, [#allocation4], 128, 128, 8
    $region21: #{tpu_custom_call.1} parent=1 // pred_fallthru
      _
    // Predicated region
    $region22: #{tpu_custom_call.1} parent=1 // pred_check
      _
    $region23: #{tpu_custom_call.1} parent=1 // pred_check_branch
      %108 = sbr.rel (0) target = $region25
    $region24: #{tpu_custom_call.1} parent=1 // pred_region
      %109 = dma.done [#allocation4], 256
    $region25: #{tpu_custom_call.1} parent=1 // pred_fallthru
      _
    %110 = vsyncpa [#allocation3], 1
    %111 = vsyncpa [#allocation4], 1

</llo_original>
